<compile_context>
chip_gen: v7x
topology: tpu7x:2x2x1
jax: 0.10.0
libtpu: 0.0.40
codegen_flags: <defaults>
</compile_context>

<pallas_src>
import functools

import jax
import jax.numpy as jnp
import numpy as np
from jax.experimental import pallas as pl
from jax.experimental.pallas import tpu as pltpu


def _round_up(x: int, m: int) -> int:
    return ((x + m - 1) // m) * m


def _vmem_capacity_bytes() -> int:
    """Best-effort VMEM capacity query; conservative (v7x-class) fallback."""
    try:
        info = pltpu.get_tpu_info()
        for attr in ("vmem_capacity_bytes", "vmem_size_bytes", "vmem_bytes"):
            v = getattr(info, attr, None)
            if v:
                return int(v)
    except Exception:
        pass
    return 64 << 20


def _tile_caps():
    """Generation-aware tile caps for the tiled per-layer path."""
    vmem = _vmem_capacity_bytes()
    if vmem <= (64 << 20):
        # v7x-class: 64 MiB VMEM per TensorCore, 2 TCs per chip.
        return dict(tm=256, tn=512, tk=512, vmem_limit=40 << 20, two_cores=True)
    # v5e / v6e: 128 MiB VMEM. (v5e's default scoped limit is only 16 MiB,
    # so set vmem_limit_bytes explicitly.)
    return dict(tm=512, tn=1024, tk=512, vmem_limit=64 << 20, two_cores=False)


def _largest_tile(dim: int, align: int, cap: int) -> int:
    """Largest multiple of `align` that divides `dim` and is <= cap.

    `dim` is always a multiple of `align` by construction, so full extent is
    used when dim <= cap (no extra padding / re-padding between layers).
    """
    if dim <= cap:
        return dim
    best = align
    t = align
    while t <= cap:
        if dim % t == 0:
            best = t
        t += align
    return best


# ---------------------------------------------------------------------------
# Whole-MLP fused kernel (small networks): grid over M only, weights resident.
# ---------------------------------------------------------------------------
def _fused_mlp_kernel(*refs, num_layers, relu_flags):
    x_ref = refs[0]
    o_ref = refs[1 + 3 * num_layers]
    h = x_ref[...]                                    # bf16 activation tile
    for l in range(num_layers):
        w_ref = refs[1 + 3 * l]                       # (Kp, Np) bf16
        s_ref = refs[2 + 3 * l]                       # (1, Np) f32 scale
        b_ref = refs[3 + 3 * l]                       # (1, Np) f32 shift
        acc = jnp.dot(h.astype(jnp.bfloat16), w_ref[...],
                      preferred_element_type=jnp.float32)
        h = acc * s_ref[...] + b_ref[...]             # fused bias + BN
        if relu_flags[l]:
            h = jnp.maximum(h, 0.0)
    o_ref[...] = h.astype(o_ref.dtype)


@functools.partial(jax.jit, static_argnames=("relu_flags", "out_dim"))
def _fused_mlp_forward(x, weights, scales, shifts, *, relu_flags, out_dim):
    M, K = x.shape
    L = len(weights)
    Kp0 = weights[0].shape[0]
    Np_last = weights[-1].shape[1]

    Mp = _round_up(M, 16)                 # 16: bf16 sublane packing
    tm = Mp if Mp <= 256 else 256
    Mp = _round_up(Mp, tm)
    if Mp // tm == 1 and Mp % 32 == 0:
        tm = Mp // 2                      # give both v7x TensorCores a block

    x_p = jnp.zeros((Mp, Kp0), jnp.bfloat16).at[:M, :K].set(x.astype(jnp.bfloat16))

    in_specs = [pl.BlockSpec((tm, Kp0), lambda i: (i, 0))]
    for w in weights:
        Kp, Np = w.shape
        in_specs.append(pl.BlockSpec((Kp, Np), lambda i: (0, 0)))   # weight (resident)
        in_specs.append(pl.BlockSpec((1, Np), lambda i: (0, 0)))    # scale
        in_specs.append(pl.BlockSpec((1, Np), lambda i: (0, 0)))    # shift
    out_specs = pl.BlockSpec((tm, Np_last), lambda i: (i, 0))

    kernel = functools.partial(_fused_mlp_kernel, num_layers=L,
                               relu_flags=relu_flags)
    flops = 2 * Mp * sum(w.shape[0] * w.shape[1] for w in weights)
    bytes_acc = (Mp * Kp0 * 2 + Mp * Np_last * 4
                 + sum(w.size * 2 + 2 * w.shape[1] * 4 for w in weights))

    out = pl.pallas_call(
        kernel,
        out_shape=jax.ShapeDtypeStruct((Mp, Np_last), jnp.float32),
        grid_spec=pltpu.PrefetchScalarGridSpec(
            num_scalar_prefetch=0,
            grid=(Mp // tm,),
            in_specs=in_specs,
            out_specs=out_specs,
        ),
        compiler_params=pltpu.CompilerParams(
            dimension_semantics=("parallel",),
            vmem_limit_bytes=32 << 20,
        ),
        cost_estimate=pl.CostEstimate(flops=flops, transcendentals=0,
                                      bytes_accessed=bytes_acc),
    )(x_p, *[a for trip in zip(weights, scales, shifts) for a in trip])

    return out[:M, :out_dim]


# ---------------------------------------------------------------------------
# Tiled per-layer fallback (large layers): (M/tm, N/tn, K/tk) grid.
# ---------------------------------------------------------------------------
def _tiled_linear_kernel(x_ref, w_ref, s_ref, b_ref, o_ref, acc_ref, *, relu):
    k = pl.program_id(2)

    @pl.when(k == 0)
    def _():
        acc_ref[...] = jnp.zeros_like(acc_ref)

    acc_ref[...] += jnp.dot(x_ref[...], w_ref[...],
                            preferred_element_type=jnp.float32)

    @pl.when(k == pl.num_programs(2) - 1)
    def _():
        out = acc_ref[...] * s_ref[...] + b_ref[...]
        if relu:
            out = jnp.maximum(out, 0.0)
        o_ref[...] = out.astype(o_ref.dtype)


def _tiled_linear(h, w, scale, shift, *, relu, out_dtype, caps):
    Mp, Kp = h.shape
    Kp2, Np = w.shape
    assert Kp == Kp2, (Kp, Kp2)

    tm = _largest_tile(Mp, 16, caps["tm"])
    tk = _largest_tile(Kp, 128, caps["tk"])
    tn = _largest_tile(Np, 128, caps["tn"])
    # v7x megacore: make sure a "parallel" axis has >= 2 blocks for small M.
    if caps["two_cores"] and Mp // tm == 1 and Np // tn == 1 and Np >= 256:
        tn = _largest_tile(Np, 128, Np // 2)

    grid = (Mp // tm, Np // tn, Kp // tk)
    kernel = functools.partial(_tiled_linear_kernel, relu=relu)
    out_bytes = jnp.dtype(out_dtype).itemsize
    cost = pl.CostEstimate(
        flops=2 * Mp * Np * Kp,
        transcendentals=0,
        bytes_accessed=(Mp * Kp * 2 * (Np // tn)          # x re-streamed N/tn times
                        + Kp * Np * 2 * (Mp // tm)        # w re-streamed M/tm times
                        + 2 * Np * 4 * (Mp // tm)         # scale/shift
                        + Mp * Np * out_bytes))

    return pl.pallas_call(
        kernel,
        out_shape=jax.ShapeDtypeStruct((Mp, Np), out_dtype),
        grid_spec=pltpu.PrefetchScalarGridSpec(
            num_scalar_prefetch=0,
            grid=grid,
            in_specs=[
                pl.BlockSpec((tm, tk), lambda i, j, k: (i, k)),
                pl.BlockSpec((tk, tn), lambda i, j, k: (k, j)),
                pl.BlockSpec((1, tn), lambda i, j, k: (0, j)),
                pl.BlockSpec((1, tn), lambda i, j, k: (0, j)),
            ],
            out_specs=pl.BlockSpec((tm, tn), lambda i, j, k: (i, j)),
            scratch_shapes=[pltpu.VMEM((tm, tn), jnp.float32)],
        ),
        compiler_params=pltpu.CompilerParams(
            dimension_semantics=("parallel", "parallel", "arbitrary"),
            vmem_limit_bytes=caps["vmem_limit"],
        ),
        cost_estimate=cost,
    )(h, w, scale, shift)


@functools.partial(jax.jit, static_argnames=("relu_flags", "out_dim"))
def _tiled_mlp_forward(x, weights, scales, shifts, *, relu_flags, out_dim):
    M, K = x.shape
    caps = _tile_caps()
    Mp = _round_up(M, 16)
    Kp0 = weights[0].shape[0]
    # Pad once; activations stay in the padded layout (bf16) between layers.
    h = jnp.zeros((Mp, Kp0), jnp.bfloat16).at[:M, :K].set(x.astype(jnp.bfloat16))
    L = len(weights)
    for l in range(L):
        is_last = (l == L - 1)
        h = _tiled_linear(h, weights[l], scales[l], shifts[l],
                          relu=relu_flags[l],
                          out_dtype=jnp.float32 if is_last else jnp.bfloat16,
                          caps=caps)
    return h[:M, :out_dim]


def _fits_fused(prep, M) -> bool:
    """Conservative VMEM estimate for the whole-MLP fused path."""
    tm = min(_round_up(M, 16), 256)
    w_bytes = sum(p["Kp"] * p["Np"] * 2 + 2 * p["Np"] * 4 for p in prep)
    act_bytes = tm * prep[0]["Kp"] * 2 + tm * prep[-1]["Np"] * 4
    act_bytes += sum(tm * p["Np"] * 4 for p in prep)
    return 2 * (w_bytes + act_bytes) < (12 << 20)   # assume full double-buffering


# ---------------------------------------------------------------------------
# JAX/Pallas mirror of the PyTorch MLP (eval-mode BatchNorm).
# ---------------------------------------------------------------------------
class MLP:
    BN_EPS = 1e-5

    def __init__(self, inp_dim, out_dim, hidden_layers=(), batchnorm=True,
                 bias=True, *, key):
        self.inp_dim = inp_dim
        self.out_dim = out_dim
        self.layers = []                       # logical params (for reference)
        dims = list(hidden_layers) + [out_dim]
        last = inp_dim
        for li, d in enumerate(dims):
            key, wk, bk, gk, bk2, mk, vk = jax.random.split(key, 7)
            bound = 1.0 / np.sqrt(last)
            # PyTorch Linear init: U(-1/sqrt(fan_in), 1/sqrt(fan_in)).
            w = jax.random.uniform(wk, (d, last), jnp.float32, -bound, bound)
            # Weights are bf16-representable so the bf16-operand MXU path is
            # bit-exact w.r.t. the f32 values (test-only choice).
            w = w.astype(jnp.bfloat16).astype(jnp.float32)
            b = (jax.random.uniform(bk, (d,), jnp.float32, -bound, bound)
                 if bias else jnp.zeros((d,), jnp.float32))
            is_hidden = li < len(dims) - 1
            layer = {"w": w, "b": b, "relu": is_hidden}
            if batchnorm and is_hidden:
                # Non-default BN params / running stats so the fused
                # scale/shift path is actually exercised.
                layer["gamma"] = 1.0 + 0.1 * jax.random.normal(gk, (d,), jnp.float32)
                layer["beta"] = 0.1 * jax.random.normal(bk2, (d,), jnp.float32)
                layer["mean"] = 0.1 * jax.random.normal(mk, (d,), jnp.float32)
                layer["var"] = jnp.abs(jax.random.normal(vk, (d,), jnp.float32)) * 0.5 + 0.5
            self.layers.append(layer)
            last = d                           # BUG FIX: update fan-in per layer

        # One-time weight prep: transpose, fold BN into (scale, shift),
        # pad to lane multiples, cast weights to bf16.
        self._prep = []
        for layer in self.layers:
            d_out, d_in = layer["w"].shape
            Kp = _round_up(d_in, 128)
            Np = _round_up(d_out, 128)
            w_t = jnp.zeros((Kp, Np), jnp.float32).at[:d_in, :d_out].set(layer["w"].T)
            w_t = w_t.astype(jnp.bfloat16)
            if "gamma" in layer:
                s = layer["gamma"] / jnp.sqrt(layer["var"] + self.BN_EPS)
                shift = (layer["b"] - layer["mean"]) * s + layer["beta"]
            else:
                s = jnp.ones_like(layer["b"])
                shift = layer["b"]
            scale_p = jnp.zeros((1, Np), jnp.float32).at[0, :d_out].set(s)
            shift_p = jnp.zeros((1, Np), jnp.float32).at[0, :d_out].set(shift)
            self._prep.append(dict(w=w_t, scale=scale_p, shift=shift_p,
                                   relu=layer["relu"], Kp=Kp, Np=Np))

    def __call__(self, x, *, force_tiled=False):
        lead = x.shape[:-1]
        h2d = x.reshape(-1, x.shape[-1]).astype(jnp.float32)
        M = h2d.shape[0]
        weights = tuple(p["w"] for p in self._prep)
        scales = tuple(p["scale"] for p in self._prep)
        shifts = tuple(p["shift"] for p in self._prep)
        relu_flags = tuple(bool(p["relu"]) for p in self._prep)

        if (not force_tiled) and _fits_fused(self._prep, M):
            out = _fused_mlp_forward(h2d, weights, scales, shifts,
                                     relu_flags=relu_flags, out_dim=self.out_dim)
        else:
            out = _tiled_mlp_forward(h2d, weights, scales, shifts,
                                     relu_flags=relu_flags, out_dim=self.out_dim)
        return out.reshape(lead + (self.out_dim,))


def _reference(x, mlp: MLP):
    """Pure-JAX reference of the same forward pass (bf16 matmul operands,
    f32 accumulation/BN — same precision contract as the kernels)."""
    h = x.reshape(-1, x.shape[-1]).astype(jnp.float32)
    for layer in mlp.layers:
        hq = h.astype(jnp.bfloat16)
        wq = layer["w"].astype(jnp.bfloat16)
        z = jnp.dot(hq, wq.T, preferred_element_type=jnp.float32) + layer["b"]
        if "gamma" in layer:
            z = ((z - layer["mean"]) / jnp.sqrt(layer["var"] + MLP.BN_EPS)
                 * layer["gamma"] + layer["beta"])
        if layer["relu"]:
            z = jnp.maximum(z, 0.0)
        h = z
    return h.reshape(x.shape[:-1] + (h.shape[-1],))


if __name__ == "__main__":
    key = jax.random.PRNGKey(0)
    key, kx, km1, km2 = jax.random.split(key, 4)

    # Small shapes consistent with the module: batch=16, inp_dim=32.
    batch, inp_dim, hid, out_dim = 16, 32, 64, 16
    x = jax.random.normal(kx, (batch, inp_dim), dtype=jnp.float32)
    x = x.astype(jnp.bfloat16).astype(jnp.float32)   # bf16-representable inputs

    ok = True

    # MLP with one hidden layer + BatchNorm + ReLU, then final Linear.
    mlp1 = MLP(inp_dim, out_dim, hidden_layers=[hid], batchnorm=True,
               bias=True, key=km1)
    ref1 = np.asarray(_reference(x, mlp1))

    out1 = np.asarray(jax.block_until_ready(mlp1(x)))      # fused whole-MLP path
    ok = ok and out1.shape == (batch, out_dim)
    ok = ok and np.allclose(out1, ref1, rtol=1e-4, atol=1e-4)

    out1t = np.asarray(jax.block_until_ready(mlp1(x, force_tiled=True)))  # tiled path
    ok = ok and np.allclose(out1t, ref1, rtol=1e-4, atol=1e-4)

    # Default configuration: hidden_layers=[] -> single Linear, no activation.
    mlp2 = MLP(inp_dim, 8, hidden_layers=[], batchnorm=True, bias=True, key=km2)
    out2 = np.asarray(jax.block_until_ready(mlp2(x)))
    ref2 = np.asarray(_reference(x, mlp2))
    ok = ok and out2.shape == (batch, 8)
    ok = ok and np.allclose(out2, ref2, rtol=1e-4, atol=1e-4)

    if ok:
        print("KERNEL_OK")
</pallas_src>

<mosaic_0001>
module attributes {stable_mosaic.version = 11 : i64} {
  func.func @_fused_mlp_kernel(%arg0: i32, %arg1: memref<16x128xbf16, #tpu.memory_space<vmem>>, %arg2: memref<128x128xbf16, #tpu.memory_space<vmem>>, %arg3: memref<1x128xf32, #tpu.memory_space<vmem>>, %arg4: memref<1x128xf32, #tpu.memory_space<vmem>>, %arg5: memref<128x128xbf16, #tpu.memory_space<vmem>>, %arg6: memref<1x128xf32, #tpu.memory_space<vmem>>, %arg7: memref<1x128xf32, #tpu.memory_space<vmem>>, %arg8: memref<16x128xf32, #tpu.memory_space<vmem>>) attributes {dimension_semantics = [#tpu.dimension_semantics<parallel>], iteration_bounds = array<i64: 1>, scalar_prefetch = 0 : i64, scratch_operands = 0 : i64, tpu.core_type = #tpu.core_type<tc>, window_params = [{transform_indices = @transform_0, window_bounds = array<i64: 16, 128>}, {pipeline_mode = #tpu.pipeline_mode<synchronous>, transform_indices = @transform_1, window_bounds = array<i64: 128, 128>}, {pipeline_mode = #tpu.pipeline_mode<synchronous>, transform_indices = @transform_2, window_bounds = array<i64: 1, 128>}, {pipeline_mode = #tpu.pipeline_mode<synchronous>, transform_indices = @transform_3, window_bounds = array<i64: 1, 128>}, {pipeline_mode = #tpu.pipeline_mode<synchronous>, transform_indices = @transform_4, window_bounds = array<i64: 128, 128>}, {pipeline_mode = #tpu.pipeline_mode<synchronous>, transform_indices = @transform_5, window_bounds = array<i64: 1, 128>}, {pipeline_mode = #tpu.pipeline_mode<synchronous>, transform_indices = @transform_6, window_bounds = array<i64: 1, 128>}, {transform_indices = @transform_7, window_bounds = array<i64: 16, 128>}]} {
    %c0 = arith.constant 0 : index
    %c0_0 = arith.constant 0 : index
    %0 = vector.load %arg1[%c0, %c0_0] : memref<16x128xbf16, #tpu.memory_space<vmem>>, vector<16x128xbf16>
    %c0_1 = arith.constant 0 : index
    %c0_2 = arith.constant 0 : index
    %1 = vector.load %arg2[%c0_1, %c0_2] : memref<128x128xbf16, #tpu.memory_space<vmem>>, vector<128x128xbf16>
    %cst = arith.constant dense<0.000000e+00> : vector<16x128xf32>
    %2 = tpu.matmul %0, %1, %cst {dimension_numbers = #tpu.dot_dimension_numbers<[1], [0], [0], [1], [0, 0, 1, 1], [], []>} : vector<16x128xbf16>, vector<128x128xbf16>, vector<16x128xf32> -> vector<16x128xf32>
    %c0_3 = arith.constant 0 : index
    %c0_4 = arith.constant 0 : index
    %3 = vector.load %arg3[%c0_3, %c0_4] : memref<1x128xf32, #tpu.memory_space<vmem>>, vector<1x128xf32>
    %4 = vector.broadcast %3 : vector<1x128xf32> to vector<16x128xf32>
    %5 = arith.mulf %2, %4 : vector<16x128xf32>
    %c0_5 = arith.constant 0 : index
    %c0_6 = arith.constant 0 : index
    %6 = vector.load %arg4[%c0_5, %c0_6] : memref<1x128xf32, #tpu.memory_space<vmem>>, vector<1x128xf32>
    %7 = vector.broadcast %6 : vector<1x128xf32> to vector<16x128xf32>
    %8 = arith.addf %5, %7 : vector<16x128xf32>
    %cst_7 = arith.constant 0.000000e+00 : f32
    %9 = vector.broadcast %cst_7 : f32 to vector<16x128xf32>
    %10 = arith.maximumf %8, %9 : vector<16x128xf32>
    %11 = arith.truncf %10 : vector<16x128xf32> to vector<16x128xbf16>
    %c0_8 = arith.constant 0 : index
    %c0_9 = arith.constant 0 : index
    %12 = vector.load %arg5[%c0_8, %c0_9] : memref<128x128xbf16, #tpu.memory_space<vmem>>, vector<128x128xbf16>
    %cst_10 = arith.constant dense<0.000000e+00> : vector<16x128xf32>
    %13 = tpu.matmul %11, %12, %cst_10 {dimension_numbers = #tpu.dot_dimension_numbers<[1], [0], [0], [1], [0, 0, 1, 1], [], []>} : vector<16x128xbf16>, vector<128x128xbf16>, vector<16x128xf32> -> vector<16x128xf32>
    %c0_11 = arith.constant 0 : index
    %c0_12 = arith.constant 0 : index
    %14 = vector.load %arg6[%c0_11, %c0_12] : memref<1x128xf32, #tpu.memory_space<vmem>>, vector<1x128xf32>
    %15 = vector.broadcast %14 : vector<1x128xf32> to vector<16x128xf32>
    %16 = arith.mulf %13, %15 : vector<16x128xf32>
    %c0_13 = arith.constant 0 : index
    %c0_14 = arith.constant 0 : index
    %17 = vector.load %arg7[%c0_13, %c0_14] : memref<1x128xf32, #tpu.memory_space<vmem>>, vector<1x128xf32>
    %18 = vector.broadcast %17 : vector<1x128xf32> to vector<16x128xf32>
    %19 = arith.addf %16, %18 : vector<16x128xf32>
    %c0_15 = arith.constant 0 : index
    %c0_16 = arith.constant 0 : index
    %20 = vector.load %arg8[%c0_15, %c0_16] : memref<16x128xf32, #tpu.memory_space<vmem>>, vector<16x128xf32>
    tpu.vector_store %arg8[%c0_15, %c0_16], %19 {strides = array<i32>} : memref<16x128xf32, #tpu.memory_space<vmem>>, vector<16x128xf32>,
    return
  }
  func.func @transform_0(%arg0: i32) -> (i32, i32) {
    %c0_i32 = arith.constant 0 : i32
    %c0_i32_0 = arith.constant 0 : i32
    return %arg0, %c0_i32 : i32, i32
  }
  func.func @transform_1(%arg0: i32) -> (i32, i32) {
    %c0_i32 = arith.constant 0 : i32
    %c0_i32_0 = arith.constant 0 : i32
    %c0_i32_1 = arith.constant 0 : i32
    return %c0_i32, %c0_i32_0 : i32, i32
  }
  func.func @transform_2(%arg0: i32) -> (i32, i32) {
    %c0_i32 = arith.constant 0 : i32
    %c0_i32_0 = arith.constant 0 : i32
    %c0_i32_1 = arith.constant 0 : i32
    return %c0_i32, %c0_i32_0 : i32, i32
  }
  func.func @transform_3(%arg0: i32) -> (i32, i32) {
    %c0_i32 = arith.constant 0 : i32
    %c0_i32_0 = arith.constant 0 : i32
    %c0_i32_1 = arith.constant 0 : i32
    return %c0_i32, %c0_i32_0 : i32, i32
  }
  func.func @transform_4(%arg0: i32) -> (i32, i32) {
    %c0_i32 = arith.constant 0 : i32
    %c0_i32_0 = arith.constant 0 : i32
    %c0_i32_1 = arith.constant 0 : i32
    return %c0_i32, %c0_i32_0 : i32, i32
  }
  func.func @transform_5(%arg0: i32) -> (i32, i32) {
    %c0_i32 = arith.constant 0 : i32
    %c0_i32_0 = arith.constant 0 : i32
    %c0_i32_1 = arith.constant 0 : i32
    return %c0_i32, %c0_i32_0 : i32, i32
  }
  func.func @transform_6(%arg0: i32) -> (i32, i32) {
    %c0_i32 = arith.constant 0 : i32
    %c0_i32_0 = arith.constant 0 : i32
    %c0_i32_1 = arith.constant 0 : i32
    return %c0_i32, %c0_i32_0 : i32, i32
  }
  func.func @transform_7(%arg0: i32) -> (i32, i32) {
    %c0_i32 = arith.constant 0 : i32
    %c0_i32_0 = arith.constant 0 : i32
    return %arg0, %c0_i32 : i32, i32
  }
}

</mosaic_0001>

<llo_original>
// kernel: _fused_mlp_forward.1
$region0: #{_fused_mlp_forward.1}
  #allocation0 [shape = 'u32[]', space=smem, size = 0x4, offset = 0x4, fixed_abs, tag = 'smem constant byte address 0x4 - core index']
  #allocation1 [shape = 'u32[144,128]{1,0:T(1,128)}', space=vmem, size = 0x12000, scoped, tag = 'internal scratch']
  %s0 = inlined_call_operand.vmem [shape: bf16[16,128], index: 0, kind: input, shape index: {}]
  %s1 = inlined_call_operand.hbm [shape: bf16[128,128], index: 1, kind: input, shape index: {}]
  %s2 = inlined_call_operand.vmem [shape: f32[1,128], index: 2, kind: input, shape index: {}]
  %s3 = inlined_call_operand.vmem [shape: f32[1,128], index: 3, kind: input, shape index: {}]
  %s4 = inlined_call_operand.hbm [shape: bf16[128,128], index: 4, kind: input, shape index: {}]
  %s5 = inlined_call_operand.vmem [shape: f32[1,128], index: 5, kind: input, shape index: {}]
  %s6 = inlined_call_operand.vmem [shape: f32[1,128], index: 6, kind: input, shape index: {}]
  %s7 = inlined_call_operand.hbm [shape: f32[16,128], index: 7, kind: output, shape index: {}]
  %s8 = sld [smem:[#allocation0]]
  $region46: #{_fused_mlp_forward.1} parent=0
    _
  %s10 = ssub.s32 1, %s8
  %s11 = scalar_select 0, %s10, %s8
  $region1: #{_fused_mlp_forward.1} parent=0
    #allocation2 [shape = 'u8[32768]{0}', space=vmem, size = 0x8000, scoped, tag = 'input window, operand 1, single buffered']
    #allocation3 [shape = 's32[1]{0}', space=sflag, size = 0x4, scoped, tag = 'scoped memory for _fused_mlp_forward.1']
    #allocation4 [shape = 's32[1]{0}', space=sflag, size = 0x4, scoped, tag = 'scoped memory for _fused_mlp_forward.1']
    #allocation5 [shape = 'u8[32768]{0}', space=vmem, size = 0x8000, scoped, tag = 'input window, operand 4, single buffered']
    #allocation6 [shape = 's32[1]{0}', space=sflag, size = 0x4, scoped, tag = 'scoped memory for _fused_mlp_forward.1']
    #allocation7 [shape = 'u8[8192]{0}', space=vmem, size = 0x2000, scoped, tag = 'output window, operand 0, single buffered']
    %12 = vsyncpa [#allocation3], 0
    %13 = vsyncpa [#allocation6], 0
    %14 = vsyncpa [#allocation4], 0
    // Predicated region
    $region2: #{_fused_mlp_forward.1} parent=1 // pred_check
      _
    $region3: #{_fused_mlp_forward.1} parent=1 // pred_check_branch
      %16 = sbr.rel (0) target = $region5
    $region4: #{_fused_mlp_forward.1} parent=1 // pred_region
      _
    $region5: #{_fused_mlp_forward.1} parent=1 // pred_fallthru
      _
    // Predicated region
    $region6: #{_fused_mlp_forward.1} parent=1 // pred_check
      _
    $region7: #{_fused_mlp_forward.1} parent=1 // pred_check_branch
      %18 = sbr.rel (0) target = $region9
    $region8: #{_fused_mlp_forward.1} parent=1 // pred_region
      %s20 = ssub.s32 1024, 1024
      %21 = vsyncadd [#allocation3], %s20
      %s22 = sshll.u32 [#allocation2], 4
      %s23 = int_to_ptr.vmem [resolvable:$true] %s22
      %28 = dma.hbm_to_vmem [thread:$0]  %s1, 1024, %s23, [#allocation3], 64, 64, 4
    $region9: #{_fused_mlp_forward.1} parent=1 // pred_fallthru
      _
    // Predicated region
    $region10: #{_fused_mlp_forward.1} parent=1 // pred_check
      _
    $region11: #{_fused_mlp_forward.1} parent=1 // pred_check_branch
      %30 = sbr.rel (0) target = $region13
    $region12: #{_fused_mlp_forward.1} parent=1 // pred_region
      _
    $region13: #{_fused_mlp_forward.1} parent=1 // pred_fallthru
      _
    // Predicated region
    $region14: #{_fused_mlp_forward.1} parent=1 // pred_check
      _
    $region15: #{_fused_mlp_forward.1} parent=1 // pred_check_branch
      %32 = sbr.rel (0) target = $region17
    $region16: #{_fused_mlp_forward.1} parent=1 // pred_region
      _
    $region17: #{_fused_mlp_forward.1} parent=1 // pred_fallthru
      _
    // Predicated region
    $region18: #{_fused_mlp_forward.1} parent=1 // pred_check
      _
    $region19: #{_fused_mlp_forward.1} parent=1 // pred_check_branch
      %34 = sbr.rel (0) target = $region21
    $region20: #{_fused_mlp_forward.1} parent=1 // pred_region
      %s36 = ssub.s32 1024, 1024
      %37 = vsyncadd [#allocation6], %s36
      %s38 = sshll.u32 [#allocation5], 4
      %s39 = int_to_ptr.vmem [resolvable:$true] %s38
      %44 = dma.hbm_to_vmem [thread:$0]  %s4, 1024, %s39, [#allocation6], 64, 64, 4
    $region21: #{_fused_mlp_forward.1} parent=1 // pred_fallthru
      _
    // Predicated region
    $region22: #{_fused_mlp_forward.1} parent=1 // pred_check
      _
    $region23: #{_fused_mlp_forward.1} parent=1 // pred_check_branch
      %46 = sbr.rel (0) target = $region25
    $region24: #{_fused_mlp_forward.1} parent=1 // pred_region
      _
    $region25: #{_fused_mlp_forward.1} parent=1 // pred_fallthru
      _
    // Predicated region
    $region26: #{_fused_mlp_forward.1} parent=1 // pred_check
      _
    $region27: #{_fused_mlp_forward.1} parent=1 // pred_check_branch
      %48 = sbr.rel (0) target = $region29
    $region28: #{_fused_mlp_forward.1} parent=1 // pred_region
      _
    $region29: #{_fused_mlp_forward.1} parent=1 // pred_fallthru
      _
    // Predicated region
    $region30: #{_fused_mlp_forward.1} parent=1 // pred_check
      _
    $region31: #{_fused_mlp_forward.1} parent=1 // pred_check_branch
      %50 = sbr.rel (0) target = $region33
    $region32: #{_fused_mlp_forward.1} parent=1 // pred_region
      %51 = dma.done [#allocation3], 1024
    $region33: #{_fused_mlp_forward.1} parent=1 // pred_fallthru
      _
    // Predicated region
    $region34: #{_fused_mlp_forward.1} parent=1 // pred_check
      _
    $region35: #{_fused_mlp_forward.1} parent=1 // pred_check_branch
      %53 = sbr.rel (0) target = $region37
    $region36: #{_fused_mlp_forward.1} parent=1 // pred_region
      %54 = dma.done [#allocation6], 1024
    $region37: #{_fused_mlp_forward.1} parent=1 // pred_fallthru
      _
    %v56 = vld [vmem:[%s0] sm:$0xf]
    %v57 = vld [vmem:[%s0 + $0x4] sm:$0xf]
    %v58 = vld [vmem:[#allocation2] sm:$0xf]
    %v59 = vld [vmem:[#allocation2 + $0x4] sm:$0xf]
    %v60 = vld [vmem:[#allocation2 + $0x8] sm:$0xf]
    %v61 = vld [vmem:[#allocation2 + $0xc] sm:$0xf]
    %v62 = vld [vmem:[#allocation2 + $0x10] sm:$0xf]
    %v63 = vld [vmem:[#allocation2 + $0x14] sm:$0xf]
    %v64 = vld [vmem:[#allocation2 + $0x18] sm:$0xf]
    %v65 = vld [vmem:[#allocation2 + $0x1c] sm:$0xf]
    %v66 = vld [vmem:[#allocation2 + $0x20] sm:$0xf]
    %v67 = vld [vmem:[#allocation2 + $0x24] sm:$0xf]
    %v68 = vld [vmem:[#allocation2 + $0x28] sm:$0xf]
    %v69 = vld [vmem:[#allocation2 + $0x2c] sm:$0xf]
    %v70 = vld [vmem:[#allocation2 + $0x30] sm:$0xf]
    %v71 = vld [vmem:[#allocation2 + $0x34] sm:$0xf]
    %v72 = vld [vmem:[#allocation2 + $0x38] sm:$0xf]
    %v73 = vld [vmem:[#allocation2 + $0x3c] sm:$0xf]
    %v76 = vunpack.c.l.b16 %v56
    %v77 = vunpack.c.l.b16 %v57
    %v78 = vpack.c.b16 %v77, %v76
    %v96 = vunpack.c.l.b16 %v58
    %v97 = vunpack.c.l.b16 %v59
    %v98 = vunpack.c.l.b16 %v60
    %v99 = vunpack.c.l.b16 %v61
    %v100 = vunpack.c.l.b16 %v62
    %v101 = vunpack.c.l.b16 %v63
    %v102 = vunpack.c.l.b16 %v64
    %v103 = vunpack.c.l.b16 %v65
    %v104 = vunpack.c.l.b16 %v66
    %v105 = vunpack.c.l.b16 %v67
    %v106 = vunpack.c.l.b16 %v68
    %v107 = vunpack.c.l.b16 %v69
    %v108 = vunpack.c.l.b16 %v70
    %v109 = vunpack.c.l.b16 %v71
    %v110 = vunpack.c.l.b16 %v72
    %v111 = vunpack.c.l.b16 %v73
    %v112 = vpack.c.b16 %v97, %v96
    %v113 = vpack.c.b16 %v99, %v98
    %v114 = vpack.c.b16 %v101, %v100
    %v115 = vpack.c.b16 %v103, %v102
    %v116 = vpack.c.b16 %v105, %v104
    %v117 = vpack.c.b16 %v107, %v106
    %v118 = vpack.c.b16 %v109, %v108
    %v119 = vpack.c.b16 %v111, %v110
    %128 = vmatprep.subr.bf16.mxu0 0
    %129 = vmatpush1.bf16.msra.mxu0 %v112
    %130 = vmatprep.subr.bf16.mxu0 0
    %131 = vmatpush1.bf16.msra.mxu0 %v113
    %132 = vmatprep.subr.bf16.mxu0 0
    %133 = vmatpush1.bf16.msra.mxu0 %v114
    %134 = vmatprep.subr.bf16.mxu0 0
    %135 = vmatpush1.bf16.msra.mxu0 %v115
    %136 = vmatprep.subr.bf16.mxu0 0
    %137 = vmatpush1.bf16.msra.mxu0 %v116
    %138 = vmatprep.subr.bf16.mxu0 0
    %139 = vmatpush1.bf16.msra.mxu0 %v117
    %140 = vmatprep.subr.bf16.mxu0 0
    %141 = vmatpush1.bf16.msra.mxu0 %v118
    %142 = vmatprep.subr.bf16.mxu0 0
    %143 = vmatpush1.bf16.msra.mxu0 %v119
    %144 = vmatprep.subr.bf16.mxu0 0
    %145 = vmatpush1.bf16.msra.mxu0 0
    %146 = vmatprep.subr.bf16.mxu0 0
    %147 = vmatpush1.bf16.msra.mxu0 0
    %148 = vmatprep.subr.bf16.mxu0 0
    %149 = vmatpush1.bf16.msra.mxu0 0
    %150 = vmatprep.subr.bf16.mxu0 0
    %151 = vmatpush1.bf16.msra.mxu0 0
    %152 = vmatprep.subr.bf16.mxu0 0
    %153 = vmatpush1.bf16.msra.mxu0 0
    %154 = vmatprep.subr.bf16.mxu0 0
    %155 = vmatpush1.bf16.msra.mxu0 0
    %156 = vmatprep.subr.bf16.mxu0 0
    %157 = vmatpush1.bf16.msra.mxu0 0
    %158 = vmatprep.subr.bf16.mxu0 0
    %159 = vmatpush1.bf16.msra.mxu0 0
    %160 = vmatprep.mubr.bf16.mxu0 0
    %161 = vmatmul.mubr.bf16.gmra.mrb[0].mxu0 %v78
    %v162 = vpop.f32.mrb[0].mxu0
    %v163 = vadd.f32 0.0, %v162
    %v164 = vpop.f32.mrb[0].mxu0
    %v165 = vpop.f32.mrb[0].mxu0
    %v166 = vadd.f32 0.0, %v165
    %v167 = vpop.f32.mrb[0].mxu0
    %168 = vdwg.mxu0
    %v169 = vld [vmem:[%s2] sm:$0x1]
    %v171 = vlaneseq
    %v172 = vshrl.u32 %v171, 7
    %v173 = vsub.s32 0, %v172
    %v174 = vrot.slane %v169, %v173
    %v176 = vmul.f32 %v163, %v174
    %v177 = vmul.f32 %v166, %v174
    %v178 = vld [vmem:[%s3] sm:$0x1]
    %v180 = vlaneseq
    %v181 = vshrl.u32 %v180, 7
    %v182 = vsub.s32 0, %v181
    %v183 = vrot.slane %v178, %v182
    %v185 = vadd.f32 %v176, %v183
    %v186 = vadd.f32 %v177, %v183
    %v187 = vmax.f32 %v185, 0.0
    %v188 = vmax.f32 %v186, 0.0
    %v189 = vpack.c.bf16 %v188, %v187
    %v190 = vld [vmem:[#allocation5] sm:$0xf]
    %v191 = vld [vmem:[#allocation5 + $0x4] sm:$0xf]
    %v192 = vld [vmem:[#allocation5 + $0x8] sm:$0xf]
    %v193 = vld [vmem:[#allocation5 + $0xc] sm:$0xf]
    %v194 = vld [vmem:[#allocation5 + $0x10] sm:$0xf]
    %v195 = vld [vmem:[#allocation5 + $0x14] sm:$0xf]
    %v196 = vld [vmem:[#allocation5 + $0x18] sm:$0xf]
    %v197 = vld [vmem:[#allocation5 + $0x1c] sm:$0xf]
    %v198 = vld [vmem:[#allocation5 + $0x20] sm:$0xf]
    %v199 = vld [vmem:[#allocation5 + $0x24] sm:$0xf]
    %v200 = vld [vmem:[#allocation5 + $0x28] sm:$0xf]
    %v201 = vld [vmem:[#allocation5 + $0x2c] sm:$0xf]
    %v202 = vld [vmem:[#allocation5 + $0x30] sm:$0xf]
    %v203 = vld [vmem:[#allocation5 + $0x34] sm:$0xf]
    %v204 = vld [vmem:[#allocation5 + $0x38] sm:$0xf]
    %v205 = vld [vmem:[#allocation5 + $0x3c] sm:$0xf]
    %v222 = vunpack.c.l.b16 %v190
    %v223 = vunpack.c.l.b16 %v191
    %v224 = vunpack.c.l.b16 %v192
    %v225 = vunpack.c.l.b16 %v193
    %v226 = vunpack.c.l.b16 %v194
    %v227 = vunpack.c.l.b16 %v195
    %v228 = vunpack.c.l.b16 %v196
    %v229 = vunpack.c.l.b16 %v197
    %v230 = vunpack.c.l.b16 %v198
    %v231 = vunpack.c.l.b16 %v199
    %v232 = vunpack.c.l.b16 %v200
    %v233 = vunpack.c.l.b16 %v201
    %v234 = vunpack.c.l.b16 %v202
    %v235 = vunpack.c.l.b16 %v203
    %v236 = vunpack.c.l.b16 %v204
    %v237 = vunpack.c.l.b16 %v205
    %v238 = vpack.c.b16 %v223, %v222
    %v239 = vpack.c.b16 %v225, %v224
    %v240 = vpack.c.b16 %v227, %v226
    %v241 = vpack.c.b16 %v229, %v228
    %v242 = vpack.c.b16 %v231, %v230
    %v243 = vpack.c.b16 %v233, %v232
    %v244 = vpack.c.b16 %v235, %v234
    %v245 = vpack.c.b16 %v237, %v236
    %254 = vmatprep.subr.bf16.mxu0 0
    %255 = vmatpush1.bf16.msra.mxu0 %v238
    %256 = vmatprep.subr.bf16.mxu0 0
    %257 = vmatpush1.bf16.msra.mxu0 %v239
    %258 = vmatprep.subr.bf16.mxu0 0
    %259 = vmatpush1.bf16.msra.mxu0 %v240
    %260 = vmatprep.subr.bf16.mxu0 0
    %261 = vmatpush1.bf16.msra.mxu0 %v241
    %262 = vmatprep.subr.bf16.mxu0 0
    %263 = vmatpush1.bf16.msra.mxu0 %v242
    %264 = vmatprep.subr.bf16.mxu0 0
    %265 = vmatpush1.bf16.msra.mxu0 %v243
    %266 = vmatprep.subr.bf16.mxu0 0
    %267 = vmatpush1.bf16.msra.mxu0 %v244
    %268 = vmatprep.subr.bf16.mxu0 0
    %269 = vmatpush1.bf16.msra.mxu0 %v245
    %270 = vmatprep.subr.bf16.mxu0 0
    %271 = vmatpush1.bf16.msra.mxu0 0
    %272 = vmatprep.subr.bf16.mxu0 0
    %273 = vmatpush1.bf16.msra.mxu0 0
    %274 = vmatprep.subr.bf16.mxu0 0
    %275 = vmatpush1.bf16.msra.mxu0 0
    %276 = vmatprep.subr.bf16.mxu0 0
    %277 = vmatpush1.bf16.msra.mxu0 0
    %278 = vmatprep.subr.bf16.mxu0 0
    %279 = vmatpush1.bf16.msra.mxu0 0
    %280 = vmatprep.subr.bf16.mxu0 0
    %281 = vmatpush1.bf16.msra.mxu0 0
    %282 = vmatprep.subr.bf16.mxu0 0
    %283 = vmatpush1.bf16.msra.mxu0 0
    %284 = vmatprep.subr.bf16.mxu0 0
    %285 = vmatpush1.bf16.msra.mxu0 0
    %286 = vmatprep.mubr.bf16.mxu0 0
    %287 = vmatmul.mubr.bf16.gmra.mrb[0].mxu0 %v189
    %v288 = vpop.f32.mrb[0].mxu0
    %v289 = vadd.f32 0.0, %v288
    %v290 = vpop.f32.mrb[0].mxu0
    %v291 = vpop.f32.mrb[0].mxu0
    %v292 = vadd.f32 0.0, %v291
    %v293 = vpop.f32.mrb[0].mxu0
    %294 = vdwg.mxu0
    %v295 = vld [vmem:[%s5] sm:$0x1]
    %v297 = vlaneseq
    %v298 = vshrl.u32 %v297, 7
    %v299 = vsub.s32 0, %v298
    %v300 = vrot.slane %v295, %v299
    %v302 = vmul.f32 %v289, %v300
    %v303 = vmul.f32 %v292, %v300
    %v304 = vld [vmem:[%s6] sm:$0x1]
    %v306 = vlaneseq
    %v307 = vshrl.u32 %v306, 7
    %v308 = vsub.s32 0, %v307
    %v309 = vrot.slane %v304, %v308
    %v311 = vadd.f32 %v302, %v309
    %v312 = vadd.f32 %v303, %v309
    %313 = vst [vmem:[#allocation7] sm:$0xff] %v311
    %314 = vst [vmem:[#allocation7 + $0x8] sm:$0xff] %v312
    // Predicated region
    $region38: #{_fused_mlp_forward.1} parent=1 // pred_check
      _
    $region39: #{_fused_mlp_forward.1} parent=1 // pred_check_branch
      %316 = sbr.rel (0) target = $region41
    $region40: #{_fused_mlp_forward.1} parent=1 // pred_region
      %s318 = ssub.s32 256, 256
      %319 = vsyncadd [#allocation4], %s318
      %s320 = sshll.u32 [#allocation7], 4
      %s321 = int_to_ptr.vmem [resolvable:$true] %s320
      %326 = dma.vmem_to_hbm [thread:$0]  %s321, 256, %s7, [#allocation4], 128, 128, 8
    $region41: #{_fused_mlp_forward.1} parent=1 // pred_fallthru
      _
    // Predicated region
    $region42: #{_fused_mlp_forward.1} parent=1 // pred_check
      _
    $region43: #{_fused_mlp_forward.1} parent=1 // pred_check_branch
      %328 = sbr.rel (0) target = $region45
    $region44: #{_fused_mlp_forward.1} parent=1 // pred_region
      %329 = dma.done [#allocation4], 256
    $region45: #{_fused_mlp_forward.1} parent=1 // pred_fallthru
      _
    %330 = vsyncpa [#allocation3], 1
    %331 = vsyncpa [#allocation6], 1
    %332 = vsyncpa [#allocation4], 1

</llo_original>
